<compile_context>
chip_gen: v7x
topology: tpu7x:2x2x1
jax: 0.10.0
libtpu: 0.0.40
codegen_flags: <defaults>
</compile_context>

<pallas_src>
import functools

import jax
import jax.numpy as jnp
from jax.experimental import pallas as pl
from jax.experimental.pallas import tpu as pltpu


def _square_kernel(x_ref, o_ref):
    x = x_ref[...]
    o_ref[...] = x * x


def _round_up(a: int, b: int) -> int:
    return ((a + b - 1) // b) * b


def _chip_defaults():
    """(target_block_bytes, num_tensorcores) picked from the TPU generation."""
    try:
        kind = jax.devices()[0].device_kind.lower()
    except Exception:  # pragma: no cover - defensive
        kind = ""
    if "v7" in kind or "7x" in kind:
        # 3.2 TB/s HBM, 2 TCs/chip, 32 MiB scoped VMEM default (64 MiB physical).
        return 6 * 1024 * 1024, 2
    if "v6" in kind:
        # 32 MiB scoped VMEM default; ~1% roofline win from 4 MiB vs 1-2 MiB blocks.
        return 4 * 1024 * 1024, 1
    # v5e (16 MiB scoped VMEM default) and anything unknown: stay conservative.
    return 2 * 1024 * 1024, 1


def _choose_tile_rows(rows, lanes, itemsize, sub, target_bytes, num_cores):
    """Row-tile: ~target_bytes per block, multiple of the sublane tile, and an
    even / >=2 step grid on 2-TensorCore chips so both cores get equal work."""
    tr = max(sub, (target_bytes // (lanes * itemsize)) // sub * sub)
    if tr >= rows:
        if num_cores >= 2 and rows >= 2 * sub:
            tr = _round_up(pl.cdiv(rows, 2), sub)          # split across both TCs
        else:
            return rows                                    # single full-extent block
    steps = pl.cdiv(rows, tr)
    if num_cores >= 2 and steps % 2 == 1 and steps < 16:
        # Odd small grid would leave one v7x TensorCore idle for the last block.
        tr2 = max(sub, _round_up(pl.cdiv(rows, steps + 1), sub))
        if tr2 < rows and pl.cdiv(rows, tr2) % 2 == 0:
            tr = tr2
    return tr


def _square_slab(x2d, *, tile_rows, donate):
    rows, lanes = x2d.shape
    dtype = x2d.dtype
    itemsize = jnp.dtype(dtype).itemsize
    n = rows * lanes
    extra = {"input_output_aliases": {0: 0}} if donate else {}
    return pl.pallas_call(
        _square_kernel,
        out_shape=jax.ShapeDtypeStruct((rows, lanes), dtype),
        grid_spec=pltpu.PrefetchScalarGridSpec(
            num_scalar_prefetch=0,
            grid=(pl.cdiv(rows, tile_rows),),   # boundary block masked by Pallas
            in_specs=[pl.BlockSpec((tile_rows, lanes), lambda i: (i, 0))],
            out_specs=pl.BlockSpec((tile_rows, lanes), lambda i: (i, 0)),
        ),
        compiler_params=pltpu.CompilerParams(
            dimension_semantics=("parallel",),
        ),
        cost_estimate=pl.CostEstimate(
            flops=n, transcendentals=0, bytes_accessed=2 * n * itemsize
        ),
        **extra,
    )(x2d)


def square_pallas(x, *, target_block_bytes=None, donate_input=False):
    """Elementwise square of x (any shape) via a Pallas TPU streaming kernel.

    donate_input=True aliases the (reshaped) input buffer to the output; only do
    this when the caller no longer needs x (e.g. under jax.jit with donation).
    """
    orig_shape = x.shape
    dtype = x.dtype
    n = x.size
    if n == 0:
        return x

    itemsize = jnp.dtype(dtype).itemsize
    # dtype-native sublane tile: 8 for f32, 16 for bf16/f16, 32 for int8/fp8.
    sub = max(8, 32 // itemsize)

    default_bytes, num_cores = _chip_defaults()
    target_bytes = target_block_bytes or default_bytes

    n_main = (n // 128) * 128
    if n_main == 0:
        # Fewer than 128 elements: a kernel launch costs more than the work itself.
        return x * x

    # Widest lane-dense last dim that keeps the reshape metadata-only; prefer
    # rows >= sublane tile for good vreg packing, fall back to any 128-multiple.
    lanes = 128
    for cand in (4096, 2048, 1024, 512, 256, 128):
        if n_main % cand == 0 and (n_main // cand) >= sub:
            lanes = cand
            break
    else:
        for cand in (4096, 2048, 1024, 512, 256, 128):
            if n_main % cand == 0:
                lanes = cand
                break
    rows = n_main // lanes
    tile_rows = _choose_tile_rows(rows, lanes, itemsize, sub, target_bytes, num_cores)

    if n_main == n:
        # Clean path: pure-metadata reshape, single kernel pass.
        x2d = jnp.reshape(x, (rows, lanes))
        out2d = _square_slab(x2d, tile_rows=tile_rows, donate=donate_input)
        return jnp.reshape(out2d, orig_shape)

    # Ragged path (n not a multiple of 128, rare): kernel on the aligned prefix,
    # plain VPU square on the <128-element tail -- no pad pass, no output slice.
    x_flat = jnp.ravel(x)
    head = jnp.reshape(x_flat[:n_main], (rows, lanes))
    out_head = _square_slab(head, tile_rows=tile_rows, donate=False)
    tail = x_flat[n_main:]
    out_flat = jnp.concatenate([jnp.reshape(out_head, (-1,)), tail * tail])
    return jnp.reshape(out_flat, orig_shape)


if __name__ == "__main__":
    key = jax.random.PRNGKey(0)
    square = jax.jit(square_pallas, static_argnames=("target_block_bytes", "donate_input"))

    # Main NCHW-style input, consistent with the conv-style model this comes from.
    x = jax.random.normal(key, (2, 4, 16, 16), dtype=jnp.float32)
    y = jax.block_until_ready(square(x))
    assert y.shape == x.shape and y.dtype == x.dtype
    assert jnp.allclose(y, x * x, atol=1e-6, rtol=1e-6)

    k1, k2, k3, k4 = jax.random.split(key, 4)

    # Larger shape exercising the multi-block grid path.
    x2 = jax.random.normal(k1, (4, 32, 32, 32), dtype=jnp.float32)
    y2 = jax.block_until_ready(square(x2))
    assert y2.shape == x2.shape and jnp.allclose(y2, x2 * x2, atol=1e-6, rtol=1e-6)

    # Row count not a multiple of 8 -> single full-extent block.
    x3 = jax.random.normal(k2, (3, 5, 16, 16), dtype=jnp.float32)
    y3 = jax.block_until_ready(square(x3))
    assert y3.shape == x3.shape and jnp.allclose(y3, x3 * x3, atol=1e-6, rtol=1e-6)

    # Non-128-divisible size -> aligned-prefix kernel + jnp tail (no pad/slice passes).
    x4 = jax.random.normal(k3, (7, 100), dtype=jnp.float32)
    y4 = jax.block_until_ready(square(x4))
    assert y4.shape == x4.shape and jnp.allclose(y4, x4 * x4, atol=1e-6, rtol=1e-6)

    # bf16 path (16-sublane native tile).
    x5 = jax.random.normal(k4, (2, 8, 16), dtype=jnp.bfloat16)
    y5 = jax.block_until_ready(square(x5))
    assert y5.shape == x5.shape and y5.dtype == x5.dtype
    assert jnp.allclose(y5.astype(jnp.float32), (x5 * x5).astype(jnp.float32),
                        atol=1e-2, rtol=1e-2)

    print("KERNEL_OK")
</pallas_src>

<mosaic_0001>
module attributes {stable_mosaic.version = 11 : i64} {
  func.func @_square_kernel(%arg0: i32, %arg1: memref<8x256xf32, #tpu.memory_space<vmem>>, %arg2: memref<8x256xf32, #tpu.memory_space<vmem>>) attributes {dimension_semantics = [#tpu.dimension_semantics<parallel>], iteration_bounds = array<i64: 1>, scalar_prefetch = 0 : i64, scratch_operands = 0 : i64, tpu.core_type = #tpu.core_type<tc>, window_params = [{transform_indices = @transform_0, window_bounds = array<i64: 8, 256>}, {transform_indices = @transform_1, window_bounds = array<i64: 8, 256>}]} {
    %c0 = arith.constant 0 : index
    %c0_0 = arith.constant 0 : index
    %0 = vector.load %arg1[%c0, %c0_0] : memref<8x256xf32, #tpu.memory_space<vmem>>, vector<8x256xf32>
    %1 = arith.mulf %0, %0 : vector<8x256xf32>
    %c0_1 = arith.constant 0 : index
    %c0_2 = arith.constant 0 : index
    %2 = vector.load %arg2[%c0_1, %c0_2] : memref<8x256xf32, #tpu.memory_space<vmem>>, vector<8x256xf32>
    tpu.vector_store %arg2[%c0_1, %c0_2], %1 {strides = array<i32>} : memref<8x256xf32, #tpu.memory_space<vmem>>, vector<8x256xf32>,
    return
  }
  func.func @transform_0(%arg0: i32) -> (i32, i32) {
    %c0_i32 = arith.constant 0 : i32
    %c0_i32_0 = arith.constant 0 : i32
    return %arg0, %c0_i32 : i32, i32
  }
  func.func @transform_1(%arg0: i32) -> (i32, i32) {
    %c0_i32 = arith.constant 0 : i32
    %c0_i32_0 = arith.constant 0 : i32
    return %arg0, %c0_i32 : i32, i32
  }
}

</mosaic_0001>

<llo_original>
// kernel: square_pallas.1
$region0: #{square_pallas.1}
  #allocation0 [shape = 'u32[]', space=smem, size = 0x4, offset = 0x4, fixed_abs, tag = 'smem constant byte address 0x4 - core index']
  #allocation1 [shape = 'u32[144,128]{1,0:T(1,128)}', space=vmem, size = 0x12000, scoped, tag = 'internal scratch']
  %s0 = inlined_call_operand.vmem [shape: f32[8,256], index: 0, kind: input, shape index: {}]
  %s1 = inlined_call_operand.vmem [shape: f32[8,256], index: 1, kind: output, shape index: {}]
  %s2 = sld [smem:[#allocation0]]
  $region14: #{square_pallas.1} parent=0
    _
  %s4 = ssub.s32 1, %s2
  %s5 = scalar_select 0, %s4, %s2
  // Predicated region
  $region2: #{square_pallas.1} parent=0 // pred_check
    _
  $region3: #{square_pallas.1} parent=0 // pred_check_branch
    %7 = sbr.rel (0) target = $region5
  $region4: #{square_pallas.1} parent=0 // pred_region
    _
  $region5: #{square_pallas.1} parent=0 // pred_fallthru
    _
  %v8 = vld [vmem:[%s0] sm:$0xff]
  %v9 = vld [vmem:[%s0 + $0x8] sm:$0xff]
  %v10 = vmul.f32 %v8, %v8
  %v11 = vmul.f32 %v9, %v9
  %12 = vst [vmem:[%s1] sm:$0xff] %v10
  %13 = vst [vmem:[%s1 + $0x8] sm:$0xff] %v11
  // Predicated region
  $region6: #{square_pallas.1} parent=0 // pred_check
    _
  $region7: #{square_pallas.1} parent=0 // pred_check_branch
    %15 = sbr.rel (0) target = $region9
  $region8: #{square_pallas.1} parent=0 // pred_region
    _
  $region9: #{square_pallas.1} parent=0 // pred_fallthru
    _
  // Predicated region
  $region10: #{square_pallas.1} parent=0 // pred_check
    _
  $region11: #{square_pallas.1} parent=0 // pred_check_branch
    %17 = sbr.rel (0) target = $region13
  $region12: #{square_pallas.1} parent=0 // pred_region
    _
  $region13: #{square_pallas.1} parent=0 // pred_fallthru
    _

</llo_original>
